<compile_context>
chip_gen: v6e
topology: v6e:2x2x1
jax: 0.10.0
libtpu: 0.0.40
codegen_flags: <defaults>
</compile_context>

<pallas_src>
import warnings

import jax
import jax.numpy as jnp
from jax.experimental import pallas as pl
from jax.experimental.pallas import tpu as pltpu

# Donation is best-effort; if XLA cannot reuse the donated buffer it silently
# copies and emits this (harmless) warning.
warnings.filterwarnings("ignore", message="Some donated buffers were not usable")

_LANE_CANDIDATES = (2048, 1024, 512, 256, 128)   # widest lane-dense last dim first


def _swish_kernel(x_ref, o_ref):
    x = x_ref[...]
    xf = x.astype(jnp.float32)
    o_ref[...] = (xf * jax.nn.sigmoid(xf)).astype(o_ref.dtype)


def _cdiv(a: int, b: int) -> int:
    return -(-a // b)


def _round_up(x: int, m: int) -> int:
    return _cdiv(x, m) * m


def _sublane_multiple(itemsize: int) -> int:
    # Native sublane packing: 8 for 32-bit, 16 for 16-bit, 32 for 8-bit dtypes.
    return {4: 8, 2: 16, 1: 32}.get(itemsize, 8)


def _tpu_block_params():
    """(target block bytes, vmem_limit_bytes) per TPU generation."""
    try:
        kind = jax.devices()[0].device_kind.lower()
    except Exception:  # pragma: no cover - defensive
        kind = ""
    if "v7" in kind:
        # 64 MiB physical VMEM: 4 x 8 MiB buffers + headroom under 48 MiB.
        return 8 << 20, 48 << 20
    # v5e / v6e: 128 MiB physical VMEM; override v5e's 16 MiB scoped default.
    return 8 << 20, 64 << 20


def _choose_blocks(rows: int, lanes: int, itemsize: int, target_bytes: int):
    """Pick (block_rows, block_lanes) for a (rows, lanes) slab."""
    sub = _sublane_multiple(itemsize)
    row_bytes = lanes * itemsize
    total = rows * row_bytes

    if min(rows, sub) * row_bytes <= target_bytes:
        # Row-only blocking with full-extent (lane-dense) rows.
        bl = lanes
        if total >= (2 << 20):
            min_steps = 4       # >=2 blocks per v7x TensorCore + intra-core pipelining
        elif total >= (256 << 10):
            min_steps = 2       # store(i) overlaps load(i+1)
        else:
            min_steps = 1
        steps = max(_cdiv(total, target_bytes), min_steps)
        steps = min(steps, max(1, _cdiv(rows, sub)))
        br = _round_up(_cdiv(rows, steps), sub)   # evened-out blocks, no tiny remainder
        if rows < sub:
            br = rows                             # full extent: no masked sublanes
        return br, bl

    # A handful of rows each bigger than the budget: tile along lanes too
    # (128-aligned lane blocks; the ragged lane tail of the last block is
    # handled by Pallas masking — no pad/copy).
    br = rows if rows < sub else sub
    bl = max(128, (target_bytes // (br * itemsize)) // 128 * 128)
    bl = min(bl, _round_up(lanes, 128))
    return br, bl


def _swish_2d(x2d: jax.Array, br: int, bl: int, vmem_limit: int) -> jax.Array:
    rows, lanes = x2d.shape
    grid = (_cdiv(rows, br), _cdiv(lanes, bl))
    return pl.pallas_call(
        _swish_kernel,
        out_shape=jax.ShapeDtypeStruct((rows, lanes), x2d.dtype),
        grid_spec=pltpu.PrefetchScalarGridSpec(
            num_scalar_prefetch=0,
            grid=grid,
            in_specs=[pl.BlockSpec((br, bl), lambda i, j: (i, j))],
            out_specs=pl.BlockSpec((br, bl), lambda i, j: (i, j)),
        ),
        input_output_aliases={0: 0},   # y overwrites x's buffer: inplace=True
        compiler_params=pltpu.CompilerParams(
            dimension_semantics=("parallel", "parallel"),
            vmem_limit_bytes=vmem_limit,
        ),
    )(x2d)


def _swish_impl(x: jax.Array) -> jax.Array:
    orig_shape = x.shape
    dtype = x.dtype
    n = x.size

    if n == 0:
        return x
    if x.ndim == 0:
        # TODO(synk): scalar edge case stays in plain XLA (nothing to tile).
        xf = x.astype(jnp.float32)
        return (xf * jax.nn.sigmoid(xf)).astype(dtype)

    itemsize = jnp.dtype(dtype).itemsize
    target_bytes, vmem_limit = _tpu_block_params()

    lanes = next((c for c in _LANE_CANDIDATES if n % c == 0), None)
    if lanes is not None:
        rows = n // lanes                 # aligned fast path: lane-dense flatten
    else:
        # Ragged element count: keep the natural trailing dim (reshape is free
        # on a contiguous array). Pallas masks the partial lane/sublane tail of
        # the last block — no pad, no concatenate, no extra HBM passes, and the
        # in-place aliasing still applies.
        lanes = orig_shape[-1]
        rows = n // lanes

    x2d = x.reshape(rows, lanes)
    br, bl = _choose_blocks(rows, lanes, itemsize, target_bytes)
    out2d = _swish_2d(x2d, br, bl, vmem_limit)
    return out2d.reshape(orig_shape)


# inplace=True: donate the input so XLA can alias its buffer to the output.
swish = jax.jit(_swish_impl, donate_argnums=0)


if __name__ == "__main__":
    key = jax.random.PRNGKey(0)
    # NCHW input, same convention as the PyTorch module.
    x = jax.random.normal(key, (2, 4, 16, 16), dtype=jnp.float32)

    # Reference computed BEFORE calling swish: swish consumes (donates) its
    # input, matching the module's inplace=True semantics.
    ref = x * jax.nn.sigmoid(x)
    jax.block_until_ready(ref)

    y = swish(x)
    jax.block_until_ready(y)

    assert y.shape == ref.shape and y.dtype == ref.dtype
    assert jnp.allclose(y, ref, atol=1e-6, rtol=1e-6)

    # Also exercise a ragged (non-128-aligned) shape to cover the masked path.
    x2 = jax.random.normal(jax.random.PRNGKey(1), (3, 5, 7, 11), dtype=jnp.float32)
    ref2 = x2 * jax.nn.sigmoid(x2)
    jax.block_until_ready(ref2)
    y2 = swish(x2)
    jax.block_until_ready(y2)
    assert y2.shape == ref2.shape
    assert jnp.allclose(y2, ref2, atol=1e-6, rtol=1e-6)

    print("KERNEL_OK")
</pallas_src>

<mosaic_0001>
module attributes {stable_mosaic.version = 11 : i64} {
  func.func @_swish_kernel(%arg0: i32, %arg1: i32, %arg2: memref<1x2048xf32, #tpu.memory_space<vmem>>, %arg3: memref<1x2048xf32, #tpu.memory_space<vmem>>) attributes {dimension_semantics = [#tpu.dimension_semantics<parallel>, #tpu.dimension_semantics<parallel>], iteration_bounds = array<i64: 1, 1>, scalar_prefetch = 0 : i64, scratch_operands = 0 : i64, tpu.core_type = #tpu.core_type<tc>, window_params = [{transform_indices = @transform_0, window_bounds = array<i64: 1, 2048>}, {transform_indices = @transform_1, window_bounds = array<i64: 1, 2048>}]} {
    %c0 = arith.constant 0 : index
    %c0_0 = arith.constant 0 : index
    %0 = vector.load %arg2[%c0, %c0_0] : memref<1x2048xf32, #tpu.memory_space<vmem>>, vector<1x2048xf32>
    %1 = arith.negf %0 : vector<1x2048xf32>
    %2 = math.exp %1 : vector<1x2048xf32>
    %cst = arith.constant 1.000000e+00 : f32
    %3 = vector.broadcast %cst : f32 to vector<1x2048xf32>
    %4 = arith.addf %3, %2 : vector<1x2048xf32>
    %5 = arith.divf %3, %4 : vector<1x2048xf32>
    %6 = arith.mulf %0, %5 : vector<1x2048xf32>
    %c0_1 = arith.constant 0 : index
    %c0_2 = arith.constant 0 : index
    %7 = vector.load %arg3[%c0_1, %c0_2] : memref<1x2048xf32, #tpu.memory_space<vmem>>, vector<1x2048xf32>
    tpu.vector_store %arg3[%c0_1, %c0_2], %6 {strides = array<i32>} : memref<1x2048xf32, #tpu.memory_space<vmem>>, vector<1x2048xf32>,
    return
  }
  func.func @transform_0(%arg0: i32, %arg1: i32) -> (i32, i32) {
    %c0_i32 = arith.constant 0 : i32
    return %arg0, %arg1 : i32, i32
  }
  func.func @transform_1(%arg0: i32, %arg1: i32) -> (i32, i32) {
    %c0_i32 = arith.constant 0 : i32
    return %arg0, %arg1 : i32, i32
  }
}

</mosaic_0001>

<llo_original>
// kernel: _swish_impl.1
$region0: #{_swish_impl.1}
  #allocation0 [shape = 'u32[]', space=smem, size = 0x4, offset = 0x4, fixed_abs, tag = 'smem constant byte address 0x4 - core index']
  #allocation1 [shape = 'u32[144,128]{1,0:T(1,128)}', space=vmem, size = 0x12000, scoped, tag = 'internal scratch']
  %s0 = inlined_call_operand.vmem [shape: f32[1,2048], index: 0, kind: input, shape index: {}, may-alias: {0,1}]
  %s1 = inlined_call_operand.vmem [shape: f32[1,2048], index: 1, kind: output, shape index: {}, may-alias: {0,1}]
  %s2 = sld [smem:[#allocation0]]
  $region14: #{_swish_impl.1} parent=0
    _
  %s4 = ssub.s32 1, %s2
  %s5 = scalar_select 0, %s4, %s2
  // Predicated region
  $region2: #{_swish_impl.1} parent=0 // pred_check
    _
  $region3: #{_swish_impl.1} parent=0 // pred_check_branch
    %7 = sbr.rel (0) target = $region5
  $region4: #{_swish_impl.1} parent=0 // pred_region
    _
  $region5: #{_swish_impl.1} parent=0 // pred_fallthru
    _
  %v8 = vld [vmem:[%s0] sm:$0xff]
  %v9 = vld [vmem:[%s0 + $0x8] sm:$0xff]
  %v10 = vxor.u32 %v8, 2147483648
  %v11 = vxor.u32 %v9, 2147483648
  %v12 = vmul.f32 %v10, 1.442695
  %v13 = vpow.pop %v12
  %v14 = vmul.f32 %v11, 1.442695
  %v15 = vpow.pop %v14
  %v16 = vadd.f32 %v13, 1.0
  %v17 = vadd.f32 %v15, 1.0
  %v18 = vrcp.pop %v16
  %v19 = vmul.f32 1.0, %v18
  %v20 = vrcp.pop %v17
  %v21 = vmul.f32 1.0, %v20
  %v22 = vmul.f32 %v8, %v19
  %v23 = vmul.f32 %v9, %v21
  %24 = vst [vmem:[%s1] sm:$0xff] %v22
  %25 = vst [vmem:[%s1 + $0x8] sm:$0xff] %v23
  // Predicated region
  $region6: #{_swish_impl.1} parent=0 // pred_check
    _
  $region7: #{_swish_impl.1} parent=0 // pred_check_branch
    %27 = sbr.rel (0) target = $region9
  $region8: #{_swish_impl.1} parent=0 // pred_region
    _
  $region9: #{_swish_impl.1} parent=0 // pred_fallthru
    _
  // Predicated region
  $region10: #{_swish_impl.1} parent=0 // pred_check
    _
  $region11: #{_swish_impl.1} parent=0 // pred_check_branch
    %29 = sbr.rel (0) target = $region13
  $region12: #{_swish_impl.1} parent=0 // pred_region
    _
  $region13: #{_swish_impl.1} parent=0 // pred_fallthru
    _

</llo_original>
